<compile_context>
chip_gen: v7x
topology: tpu7x:2x2x1
jax: 0.10.0
libtpu: 0.0.40
codegen_flags: <defaults>
</compile_context>

<pallas_src>
import math
import functools

import jax
import jax.numpy as jnp
from jax import lax
from jax.experimental import pallas as pl
from jax.experimental.pallas import tpu as pltpu

_INV_SQRT2 = 1.0 / math.sqrt(2.0)


def _gelu_exact_f32(x):
    # Exact (approximate='none') GELU: 0.5 * x * (1 + erf(x / sqrt(2))).
    # Kept in f32: exact erf in bf16 loses too much precision, and v5e has no
    # bf16 VALU anyway.
    # TODO(synk): optional tanh-form GELU on the EUP slot for v7x if the f32
    # erf polynomial ever becomes the binding VALU slot.
    return 0.5 * x * (1.0 + lax.erf(x * _INV_SQRT2))


def _geglu_split_kernel(l_ref, r_ref, o_ref):
    # Blocks are [tm, tn], lane-aligned.  Partial tail row-blocks read
    # out-of-bounds garbage; results stay correct because the output store is
    # masked to the valid rows.
    left = l_ref[...].astype(jnp.float32)
    right = r_ref[...].astype(jnp.float32)
    o_ref[...] = (_gelu_exact_f32(left) * right).astype(o_ref.dtype)


def _geglu_fused_kernel(x_ref, o_ref, *, hidden):
    # Fallback path (hidden not a multiple of 128): x block [tm, 2*hidden],
    # out block [tm, hidden]; split done in-kernel.
    # TODO(synk): if non-128-multiple hiddens are ever hot, present a
    # lane-dense output layout in the wrapper instead of slicing in-kernel.
    x = x_ref[...].astype(jnp.float32)
    left = x[:, :hidden]
    right = x[:, hidden:]
    o_ref[...] = (_gelu_exact_f32(left) * right).astype(o_ref.dtype)


def _sublane_multiple(dtype):
    # Sub-32-bit dtypes pack along sublanes: f32 -> 8, bf16/fp16 -> 16,
    # int8/fp8 -> 32.
    itemsize = jnp.dtype(dtype).itemsize
    return max(8, 32 // max(1, itemsize))


def _round_up(x, m):
    return ((x + m - 1) // m) * m


def _vmem_budget_bytes():
    # Total double-buffered working-set budget.  48 MiB fits v7x's 64 MiB VMEM
    # with headroom for Mosaic internal scratch; on v5e/v6e (128 MiB) it is
    # well below the physical limit.
    cap = 64 << 20
    try:
        info = pltpu.get_tpu_info()
        cap = int(getattr(info, "vmem_capacity_bytes", cap))
    except Exception:
        pass
    return max(8 << 20, min(cap - (16 << 20), 48 << 20))


def _split_tiling(rows, hidden, itemsize, sublane, budget, block_rows):
    # Prefer tn = hidden (largest contiguous DMA per row, fewest grid steps,
    # guaranteed unmasked lane-dense output stores); trade tm down before tn.
    # tn candidates are multiple-of-128 divisors of hidden, so the right-half
    # block offset (h_blocks blocks) always lands exactly at `hidden`.
    tn, tm = None, None
    cand = hidden
    while cand >= 128:
        if hidden % cand == 0:
            per_row = 6 * cand * itemsize  # 2 bufs * (left + right + out)
            tm_cap = (budget // per_row // sublane) * sublane
            if tm_cap >= sublane:
                tn, tm = cand, tm_cap
                break
        cand -= 128
    if tn is None:  # extremely wide hidden: minimum legal tile
        tn, tm = 128, sublane
    if block_rows is not None:
        tm = min(tm, max(sublane, block_rows))
    if tm >= rows:
        tm = rows  # full extent: no divisibility requirement
    else:
        tm = max(sublane, (tm // sublane) * sublane)
    return tm, tn


def geglu(x, *, block_rows=None):
    """GEGLU(x): gelu(left, exact erf) * right, halves split on the last axis."""
    orig_shape = x.shape
    two_h = orig_shape[-1]
    assert two_h % 2 == 0, "last dim must be even for GEGLU"
    hidden = two_h // 2

    rows = 1
    for d in orig_shape[:-1]:
        rows *= d
    x2d = x.reshape(rows, two_h)

    itemsize = jnp.dtype(x.dtype).itemsize
    sublane = _sublane_multiple(x.dtype)
    budget = _vmem_budget_bytes()

    if hidden % 128 == 0:
        # Lane-aligned 2-D tiling: left/right halves delivered as separate
        # DMAs from the SAME input array via two BlockSpecs.
        tm, tn = _split_tiling(rows, hidden, itemsize, sublane, budget, block_rows)
        h_blocks = hidden // tn
        row_blocks = pl.cdiv(rows, tm)
        # v7x has 2 TensorCores sharing HBM: split a (1, 1) grid into two row
        # blocks so both cores get work ("parallel" semantics shards them).
        if row_blocks * h_blocks == 1 and rows >= 2 * sublane:
            tm = _round_up(pl.cdiv(rows, 2), sublane)
            row_blocks = pl.cdiv(rows, tm)
        need = 2 * 3 * tm * tn * itemsize  # double-buffered left + right + out
        out2d = pl.pallas_call(
            _geglu_split_kernel,
            out_shape=jax.ShapeDtypeStruct((rows, hidden), x.dtype),
            grid_spec=pltpu.PrefetchScalarGridSpec(
                num_scalar_prefetch=0,
                grid=(row_blocks, h_blocks),
                in_specs=[
                    # left half
                    pl.BlockSpec((tm, tn), lambda i, j: (i, j)),
                    # right half: offset by h_blocks blocks == exactly `hidden`
                    # elements (tn always divides hidden).
                    pl.BlockSpec((tm, tn), lambda i, j, hb=h_blocks: (i, j + hb)),
                ],
                out_specs=pl.BlockSpec((tm, tn), lambda i, j: (i, j)),
            ),
            compiler_params=pltpu.CompilerParams(
                dimension_semantics=("parallel", "parallel"),
                vmem_limit_bytes=int(max(need + (8 << 20), 32 << 20)),
            ),
        )(x2d, x2d)
    else:
        # Fallback (hidden not a multiple of 128): full-width block, split
        # in-kernel.  tm is derived from the VMEM budget so wide hiddens stay
        # within v7x's 64 MiB and the pipeline keeps double-buffering.
        per_row = 2 * (two_h + hidden) * itemsize  # double-buffered in + out
        tm = max(sublane, (budget // per_row // sublane) * sublane)
        if block_rows is not None:
            tm = min(tm, max(sublane, block_rows))
        if tm >= rows:
            tm = rows
        row_blocks = pl.cdiv(rows, tm)
        if row_blocks == 1 and rows >= 2 * sublane:
            tm = _round_up(pl.cdiv(rows, 2), sublane)
            row_blocks = pl.cdiv(rows, tm)
        need = 2 * tm * (two_h + hidden) * itemsize
        out2d = pl.pallas_call(
            functools.partial(_geglu_fused_kernel, hidden=hidden),
            out_shape=jax.ShapeDtypeStruct((rows, hidden), x.dtype),
            grid_spec=pltpu.PrefetchScalarGridSpec(
                num_scalar_prefetch=0,
                grid=(row_blocks,),
                in_specs=[pl.BlockSpec((tm, two_h), lambda i: (i, 0))],
                out_specs=pl.BlockSpec((tm, hidden), lambda i: (i, 0)),
            ),
            compiler_params=pltpu.CompilerParams(
                dimension_semantics=("parallel",),
                vmem_limit_bytes=int(max(need + (8 << 20), 32 << 20)),
            ),
        )(x2d)

    return out2d.reshape(*orig_shape[:-1], hidden)


def geglu_ref(x):
    xf = x.astype(jnp.float32)
    left, right = jnp.split(xf, 2, axis=-1)
    return (jax.nn.gelu(left, approximate=False) * right).astype(x.dtype)


if __name__ == "__main__":
    key = jax.random.PRNGKey(0)
    k1, k2, k3, k4 = jax.random.split(key, 4)

    # 1) small, non-128-multiple hidden (fallback path): batch=2, seq=8, hidden=32
    x1 = jax.random.normal(k1, (2, 8, 64), dtype=jnp.float32)
    o1 = jax.block_until_ready(geglu(x1))
    r1 = geglu_ref(x1)
    assert o1.shape == (2, 8, 32), o1.shape
    assert jnp.allclose(o1, r1, atol=1e-5, rtol=1e-5), float(jnp.max(jnp.abs(o1 - r1)))

    # 2) lane-aligned hidden (split 2-D path, odd row count -> masked tail):
    #    batch=3, seq=7, hidden=256
    x2 = jax.random.normal(k2, (3, 7, 512), dtype=jnp.float32)
    o2 = jax.block_until_ready(geglu(x2))
    r2 = geglu_ref(x2)
    assert o2.shape == (3, 7, 256), o2.shape
    assert jnp.allclose(o2, r2, atol=1e-5, rtol=1e-5), float(jnp.max(jnp.abs(o2 - r2)))

    # 3) forced small row tiles -> partial last row block (no host pad): rows=10, tm=8
    x3 = jax.random.normal(k3, (10, 256), dtype=jnp.float32)
    o3 = jax.block_until_ready(geglu(x3, block_rows=8))
    r3 = geglu_ref(x3)
    assert o3.shape == (10, 128), o3.shape
    assert jnp.allclose(o3, r3, atol=1e-5, rtol=1e-5), float(jnp.max(jnp.abs(o3 - r3)))

    # 4) bf16 input (exercises 16-sublane tm alignment + megacore row split)
    x4 = jax.random.normal(k4, (4, 16, 256), dtype=jnp.float32).astype(jnp.bfloat16)
    o4 = jax.block_until_ready(geglu(x4))
    r4 = geglu_ref(x4)
    assert o4.shape == (4, 16, 128), o4.shape
    assert jnp.allclose(o4.astype(jnp.float32), r4.astype(jnp.float32),
                        atol=1e-2, rtol=1e-2), \
        float(jnp.max(jnp.abs(o4.astype(jnp.float32) - r4.astype(jnp.float32))))

    print("KERNEL_OK")
</pallas_src>

<mosaic_0001>
module attributes {stable_mosaic.version = 11 : i64} {
  func.func @_geglu_fused_kernel(%arg0: i32, %arg1: memref<8x64xf32, #tpu.memory_space<vmem>>, %arg2: memref<8x32xf32, #tpu.memory_space<vmem>>) attributes {dimension_semantics = [#tpu.dimension_semantics<parallel>], iteration_bounds = array<i64: 2>, scalar_prefetch = 0 : i64, scratch_operands = 0 : i64, tpu.core_type = #tpu.core_type<tc>, window_params = [{transform_indices = @transform_0, window_bounds = array<i64: 8, 64>}, {transform_indices = @transform_1, window_bounds = array<i64: 8, 32>}]} {
    %c0 = arith.constant 0 : index
    %c0_0 = arith.constant 0 : index
    %0 = vector.load %arg1[%c0, %c0_0] : memref<8x64xf32, #tpu.memory_space<vmem>>, vector<8x64xf32>
    %1 = vector.extract_strided_slice %0 {offsets = [0, 0], sizes = [8, 32], strides = [1, 1]} : vector<8x64xf32> to vector<8x32xf32>
    %2 = vector.extract_strided_slice %0 {offsets = [0, 32], sizes = [8, 32], strides = [1, 1]} : vector<8x64xf32> to vector<8x32xf32>
    %cst = arith.constant 5.000000e-01 : f32
    %3 = vector.broadcast %cst : f32 to vector<8x32xf32>
    %4 = arith.mulf %3, %1 : vector<8x32xf32>
    %cst_1 = arith.constant 0.707106769 : f32
    %5 = vector.broadcast %cst_1 : f32 to vector<8x32xf32>
    %6 = arith.mulf %1, %5 : vector<8x32xf32>
    %7 = math.erf %6 : vector<8x32xf32>
    %cst_2 = arith.constant 1.000000e+00 : f32
    %8 = vector.broadcast %cst_2 : f32 to vector<8x32xf32>
    %9 = arith.addf %8, %7 : vector<8x32xf32>
    %10 = arith.mulf %4, %9 : vector<8x32xf32>
    %11 = arith.mulf %10, %2 : vector<8x32xf32>
    %c0_3 = arith.constant 0 : index
    %c0_4 = arith.constant 0 : index
    %12 = vector.load %arg2[%c0_3, %c0_4] : memref<8x32xf32, #tpu.memory_space<vmem>>, vector<8x32xf32>
    tpu.vector_store %arg2[%c0_3, %c0_4], %11 {strides = array<i32>} : memref<8x32xf32, #tpu.memory_space<vmem>>, vector<8x32xf32>,
    return
  }
  func.func @transform_0(%arg0: i32) -> (i32, i32) {
    %c0_i32 = arith.constant 0 : i32
    %c0_i32_0 = arith.constant 0 : i32
    return %arg0, %c0_i32 : i32, i32
  }
  func.func @transform_1(%arg0: i32) -> (i32, i32) {
    %c0_i32 = arith.constant 0 : i32
    %c0_i32_0 = arith.constant 0 : i32
    return %arg0, %c0_i32 : i32, i32
  }
}

</mosaic_0001>

<llo_original>
// kernel: tpu_custom_call.1
$region0: #{tpu_custom_call.1}
  #allocation0 [shape = 'u32[]', space=smem, size = 0x4, offset = 0x4, fixed_abs, tag = 'smem constant byte address 0x4 - core index']
  #allocation1 [shape = 'u32[144,128]{1,0:T(1,128)}', space=vmem, size = 0x12000, scoped, tag = 'internal scratch']
  %s0 = inlined_call_operand.hbm [shape: f32[16,64], index: 0, kind: input, shape index: {}]
  %s1 = inlined_call_operand.hbm [shape: f32[16,32], index: 1, kind: output, shape index: {}]
  %s2 = sld [smem:[#allocation0]]
  $region41: #{tpu_custom_call.1} parent=0
    _
  %s4 = ssub.s32 1, %s2
  %s5 = scalar_select 0, %s4, %s2
  $region1: #{tpu_custom_call.1} parent=0
    #allocation2 [shape = 'u8[8192]{0}', space=vmem, size = 0x2000, scoped, tag = 'input window, operand 0']
    #allocation3 [shape = 's32[2]{0}', space=sflag, size = 0x8, scoped, tag = 'scoped memory for tpu_custom_call.1']
    #allocation4 [shape = 's32[2]{0}', space=sflag, size = 0x8, scoped, tag = 'scoped memory for tpu_custom_call.1']
    #allocation5 [shape = 'u8[8192]{0}', space=vmem, size = 0x2000, scoped, tag = 'output window, operand 0']
    %6 = vsyncpa [#allocation3], 0
    %s7 = scalar_lea.sflag [#allocation3], 1
    %8 = vsyncpa %s7, 0
    %9 = vsyncpa [#allocation4], 0
    %s10 = scalar_lea.sflag [#allocation4], 1
    %11 = vsyncpa %s10, 0
    loop: start=0, step=1, limit=4
    $region2: #{tpu_custom_call.1} parent=1 // loop_pre_header
      _
    $region3: #{tpu_custom_call.1} parent=1 // loop_header
      %s13 = sphi 0, %s17
      %p14 = scmp.ge.s32.totalorder %s13, 4
      %s23 = sphi 0, %s25
      %s26 = sphi 0, %s23
      %s27 = sphi 0, %s26
      %s43 = sphi 0, %s27
      %s49 = sphi 0, %s51
      %s52 = sphi 0, %s49
      %s53 = sphi 0, %s52
      %s69 = sphi 0, %s53
    $region4: #{tpu_custom_call.1} parent=1 // loop_header_branch
      %16 = sbr.rel (%p14) target = $region8
    $region5: #{tpu_custom_call.1} parent=1 // loop_body
      %s18 = ssub.s32 %s13, 1
      %s19 = ssub.s32 %s13, 2
      %s20 = sadd.s32 %s13, 1
      %s21 = ssub.s32 %s13, %s20
      %p22 = scmp.eq.s32.totalorder %s21, 0
      %s24 = sadd.s32 %s23, 1
      %s25 = scalar_select %p22, %s23, %s24
      %p28 = pneg %p22
      %p29 = scmp.eq.s32.totalorder %s13, 1
      %p30 = por %p28, %p29
      %p31 = scmp.ne.s32.totalorder %s23, %s26
      %p32 = scmp.eq.s32.totalorder %s13, 0
      %p33 = por %p31, %p32
      %p34 = scmp.ne.s32.totalorder %s23, %s26
      %p35 = scmp.eq.s32.totalorder %s18, 1
      %p36 = por %p34, %p35
      %p37 = scmp.ne.s32.totalorder %s26, %s27
      %p38 = scmp.eq.s32.totalorder %s18, 0
      %p39 = por %p37, %p38
      %p40 = scmp.ne.s32.totalorder %s26, %s27
      %p41 = scmp.eq.s32.totalorder %s19, 1
      %p42 = por %p40, %p41
      %p44 = scmp.ne.s32.totalorder %s27, %s43
      %p45 = scmp.eq.s32.totalorder %s19, 0
      %p46 = por %p44, %p45
      %s47 = ssub.s32 %s13, %s20
      %p48 = scmp.eq.s32.totalorder %s47, 0
      %s50 = sadd.s32 %s49, 1
      %s51 = scalar_select %p48, %s49, %s50
      %p54 = pneg %p48
      %p55 = scmp.eq.s32.totalorder %s13, 1
      %p56 = por %p54, %p55
      %p57 = scmp.ne.s32.totalorder %s49, %s52
      %p58 = scmp.eq.s32.totalorder %s13, 0
      %p59 = por %p57, %p58
      %p60 = scmp.ne.s32.totalorder %s49, %s52
      %p61 = scmp.eq.s32.totalorder %s18, 1
      %p62 = por %p60, %p61
      %p63 = scmp.ne.s32.totalorder %s52, %s53
      %p64 = scmp.eq.s32.totalorder %s18, 0
      %p65 = por %p63, %p64
      %p66 = scmp.ne.s32.totalorder %s52, %s53
      %p67 = scmp.eq.s32.totalorder %s19, 1
      %p68 = por %p66, %p67
      %p70 = scmp.ne.s32.totalorder %s53, %s69
      %p71 = scmp.eq.s32.totalorder %s19, 0
      %p72 = por %p70, %p71
      %p73 = scmp.le.s32.totalorder 1, %s13
      %p74 = scmp.lt.s32.totalorder %s13, 3
      %p75 = pnand %p73, %p74
      %p76 = pneg %p75
      // Predicated region
      $region9: #{tpu_custom_call.1} parent=5 // pred_check
        _
      $region10: #{tpu_custom_call.1} parent=5 // pred_check_branch
        %78 = sbr.rel (%p75) target = $region12
      $region11: #{tpu_custom_call.1} parent=5 // pred_region
        %s79 = ssub.s32 %s13, 1
      $region12: #{tpu_custom_call.1} parent=5 // pred_fallthru
        _
      %p80 = scmp.lt.s32.totalorder %s13, 2
      // Predicated region
      $region13: #{tpu_custom_call.1} parent=5 // pred_check
        %p81 = pneg %p80
      $region14: #{tpu_custom_call.1} parent=5 // pred_check_branch
        %83 = sbr.rel (%p81) target = $region16
      $region15: #{tpu_custom_call.1} parent=5 // pred_region
        // Predicated region
        $region17: #{tpu_custom_call.1} parent=15 // pred_check
          %p84 = pneg %p33
        $region18: #{tpu_custom_call.1} parent=15 // pred_check_branch
          %86 = sbr.rel (%p84) target = $region20
        $region19: #{tpu_custom_call.1} parent=15 // pred_region
          %s87 = sand.u32 %s23, 1
          %s88 = scalar_lea.sflag [#allocation3], %s87
          %s89 = sand.u32 %s23, 1
          %s90 = smul.addr %s89, 8
          %s91 = scalar_lea.vmem [#allocation2], %s90
          %s93 = ssub.s32 128, 128
          %94 = vsyncadd %s88, %s93
          %s95 = smul.addr %s13, 128
          %s96 = scalar_lea.hbm %s0, %s95
          %s98 = sshll.u32 %s91, 4
          %s99 = int_to_ptr.vmem [resolvable:$true] %s98
          %101 = dma.hbm_to_vmem [thread:$0]  %s96, 128, %s99, %s88
        $region20: #{tpu_custom_call.1} parent=15 // pred_fallthru
          _
      $region16: #{tpu_custom_call.1} parent=5 // pred_fallthru
        _
      %p102 = scmp.le.s32.totalorder 1, %s13
      %p103 = scmp.lt.s32.totalorder %s13, 3
      %p104 = pnand %p102, %p103
      %p105 = pneg %p104
      // Predicated region
      $region21: #{tpu_custom_call.1} parent=5 // pred_check
        _
      $region22: #{tpu_custom_call.1} parent=5 // pred_check_branch
        %107 = sbr.rel (%p104) target = $region24
      $region23: #{tpu_custom_call.1} parent=5 // pred_region
        %s108 = ssub.s32 %s13, 1
        %s109 = sand.u32 %s26, 1
        %s110 = scalar_lea.sflag [#allocation3], %s109
        %s111 = sand.u32 %s26, 1
        %s112 = smul.addr %s111, 8
        %s113 = scalar_lea.vmem [#allocation2], %s112
        // Predicated region
        $region25: #{tpu_custom_call.1} parent=23 // pred_check
          %p114 = pneg %p39
        $region26: #{tpu_custom_call.1} parent=23 // pred_check_branch
          %116 = sbr.rel (%p114) target = $region28
        $region27: #{tpu_custom_call.1} parent=23 // pred_region
          %117 = dma.done %s110, 128
        $region28: #{tpu_custom_call.1} parent=23 // pred_fallthru
          _
        %s118 = sand.u32 %s26, 1
        %s119 = scalar_lea.sflag [#allocation3], %s118
        %s120 = sand.u32 %s26, 1
        %s121 = smul.addr %s120, 8
        %s122 = scalar_lea.vmem [#allocation2], %s121
        %p123 = pneg %p39
        %p124 = pneg %p36
        %p125 = pneg %p65
        %p126 = pneg %p62
        %s127 = sand.u32 %s52, 1
        %s128 = scalar_lea.sflag [#allocation4], %s127
        %s129 = sand.u32 %s52, 1
        %s130 = smul.addr %s129, 8
        %s131 = scalar_lea.vmem [#allocation5], %s130
        %v132 = vld [vmem:[%s113] sm:$0xff]
        %v133 = vmul.f32 %v132, 0.5
        %v134 = vmul.f32 %v132, 0.70710677
        %v135 = verf.f32.pop %v134
        %v136 = vadd.f32 %v135, 1.0
        %v137 = vmul.f32 %v133, %v136
        %139 = vrot.lane.b32.xlu0 %v132, 96
        %v140 = vpop.permute.xlu0 %139
        %v142 = vmul.f32 %v137, %v140
        %vm143 = vcmask 261120
        %144 = vst.msk [vmem:[%s131] sm:$0xff] %vm143, %v142
        %s145 = sand.u32 %s52, 1
        %s146 = scalar_lea.sflag [#allocation4], %s145
        %s147 = sand.u32 %s52, 1
        %s148 = smul.addr %s147, 8
        %s149 = scalar_lea.vmem [#allocation5], %s148
        // Predicated region
        $region29: #{tpu_custom_call.1} parent=23 // pred_check
          %p150 = pneg %p62
        $region30: #{tpu_custom_call.1} parent=23 // pred_check_branch
          %152 = sbr.rel (%p150) target = $region32
        $region31: #{tpu_custom_call.1} parent=23 // pred_region
          %s154 = ssub.s32 128, 128
          %155 = vsyncadd %s146, %s154
          %s156 = smul.addr %s18, 128
          %s157 = scalar_lea.hbm %s1, %s156
          %s159 = sshll.u32 %s149, 4
          %s160 = int_to_ptr.vmem [resolvable:$true] %s159
          %162 = dma.vmem_to_hbm [thread:$0]  %s160, 128, %s157, %s146
        $region32: #{tpu_custom_call.1} parent=23 // pred_fallthru
          _
      $region24: #{tpu_custom_call.1} parent=5 // pred_fallthru
        _
      %p163 = scmp.le.s32.totalorder 2, %s13
      // Predicated region
      $region33: #{tpu_custom_call.1} parent=5 // pred_check
        %p164 = pneg %p163
      $region34: #{tpu_custom_call.1} parent=5 // pred_check_branch
        %166 = sbr.rel (%p164) target = $region36
      $region35: #{tpu_custom_call.1} parent=5 // pred_region
        %s167 = ssub.s32 %s13, 2
        // Predicated region
        $region37: #{tpu_custom_call.1} parent=35 // pred_check
          %p168 = pneg %p68
        $region38: #{tpu_custom_call.1} parent=35 // pred_check_branch
          %170 = sbr.rel (%p168) target = $region40
        $region39: #{tpu_custom_call.1} parent=35 // pred_region
          %s171 = sand.u32 %s53, 1
          %s172 = scalar_lea.sflag [#allocation4], %s171
          %s173 = sand.u32 %s53, 1
          %s174 = smul.addr %s173, 8
          %s175 = scalar_lea.vmem [#allocation5], %s174
          %176 = dma.done %s172, 128
        $region40: #{tpu_custom_call.1} parent=35 // pred_fallthru
          _
      $region36: #{tpu_custom_call.1} parent=5 // pred_fallthru
        _
    $region6: #{tpu_custom_call.1} parent=1 // loop_footer
      %s17 = sadd.s32 1, %s13
    $region7: #{tpu_custom_call.1} parent=1 // loop_footer_branch
      %12 = sbr.rel target = $region3
    $region8: #{tpu_custom_call.1} parent=1 // loop_exit
      _
    %177 = vsyncpa [#allocation3], 1
    %s178 = scalar_lea.sflag [#allocation3], 1
    %179 = vsyncpa %s178, 1
    %180 = vsyncpa [#allocation4], 1
    %s181 = scalar_lea.sflag [#allocation4], 1
    %182 = vsyncpa %s181, 1

</llo_original>
